<compile_context>
chip_gen: v5e
topology: v5e:2x2
jax: 0.10.0
libtpu: 0.0.40
codegen_flags: <defaults>
</compile_context>

<pallas_src>
import functools

import jax
import jax.numpy as jnp
from jax import lax
from jax.experimental import pallas as pl
from jax.experimental.pallas import tpu as pltpu


# ----------------------------------------------------------------------------
# Fused Pallas kernel: double_conv = (conv3x3 pad1 + folded-BN + ReLU) x 2
# ----------------------------------------------------------------------------
def _up_double_conv_kernel(x2_ref, x1_ref, wt1_ref, b1_ref, wt2_ref, b2_ref,
                           o_ref, xp_s, hp_s, *, H, W, C2, C1, Cm, Co):
    # x2_ref : (1, H, W*C2)  lane-packed skip connection
    # x1_ref : (1, H, W*C1)  lane-packed upsampled x1
    # wt1_ref: (3, W*(C2+C1), W*Cm)  lowered conv1 weights (BN scale folded in)
    # b1_ref : (1, W*Cm)             lane-packed folded bias
    # wt2_ref: (3, W*Cm, W*Co)
    # b2_ref : (1, W*Co)
    # o_ref  : (1, H, W*Co)
    # xp_s   : (H+2, W*(C2+C1)) VMEM scratch, row-padded conv1 input slab
    # hp_s   : (H+2, W*Cm)      VMEM scratch, row-padded intermediate
    K1 = W * (C2 + C1)
    K2 = W * Cm

    # Build the row-padded, lane-packed conv1 input slab in VMEM.
    # Channel concat([x2, x1]) and the halo padding both happen here — no HBM
    # pad/concat copies.  Lanes [0, W*C2) hold x2 rows, [W*C2, W*(C2+C1)) x1.
    zrow1 = jnp.zeros((1, K1), jnp.float32)
    xp_s[0:1, :] = zrow1
    xp_s[H + 1:H + 2, :] = zrow1
    xp_s[1:H + 1, :] = jnp.concatenate([x2_ref[0], x1_ref[0]], axis=-1)

    # conv1 (+folded BN scale): three dy-tap matmuls, fully lane-dense
    # (H, W*C_in) @ (W*C_in, W*Cm)  ==  (16,128) @ (128,128) here.
    acc = jnp.zeros((H, W * Cm), jnp.float32)
    for dy in range(3):
        acc = acc + jnp.dot(xp_s[dy:dy + H, :], wt1_ref[dy],
                            preferred_element_type=jnp.float32)
    h = jnp.maximum(acc + b1_ref[...], 0.0)          # bias + ReLU epilogue only

    # Intermediate activation stays in VMEM between the two convs.
    zrow2 = jnp.zeros((1, K2), jnp.float32)
    hp_s[0:1, :] = zrow2
    hp_s[H + 1:H + 2, :] = zrow2
    hp_s[1:H + 1, :] = h

    # conv2 (+folded BN scale)
    acc2 = jnp.zeros((H, W * Co), jnp.float32)
    for dy in range(3):
        acc2 = acc2 + jnp.dot(hp_s[dy:dy + H, :], wt2_ref[dy],
                              preferred_element_type=jnp.float32)
    o_ref[0] = jnp.maximum(acc2 + b2_ref[...], 0.0).astype(o_ref.dtype)


# ----------------------------------------------------------------------------
# Host-side glue: lowered conv weights, BN folding, bilinear upsample matrices
# ----------------------------------------------------------------------------
def _lowered_conv_weights(w_hwio, scale, W):
    """Lower a 3x3 conv (padding=1) to three per-dy dense matmuls.

    Returns Wt of shape (3, W*C_in, W*C_out) with
      Wt[dy, xin*C_in + ci, xout*C_out + co] = w[dy, xin-xout+1, ci, co] * scale[co]
    (zero where the width tap falls outside the 3-wide kernel), so that for a
    row-zero-padded, lane-packed input Xp of shape (H+2, W*C_in):
      out[y] = sum_dy  Xp[y+dy, :] @ Wt[dy]
    reproduces conv3x3(pad=1) followed by the per-channel BN scale.
    """
    kh, kw, C_in, C_out = w_hwio.shape
    w = w_hwio * scale                                     # fold BN scale into weights
    xin = jnp.arange(W)[None, :, None]
    xout = jnp.arange(W)[None, None, :]
    dx = jnp.arange(kw)[:, None, None]
    S = (xin == xout + dx - (kw // 2)).astype(w.dtype)     # (kw, W, W) tap selector
    wt = jnp.einsum('dpx,kdio->kpixo', S, w)               # (kh, W, C_in, W, C_out)
    return wt.reshape(kh, W * C_in, W * C_out)


def _fold_bn(conv_bias, gamma, beta, mean, var, eps=1e-5):
    scale = gamma / jnp.sqrt(var + eps)
    bias = beta - mean * scale + conv_bias * scale
    return scale, bias


def _interp_matrix(n_in, n_out):
    """Row-stochastic (n_out, n_in) matrix reproducing torch bilinear, align_corners=True."""
    dst = jnp.arange(n_out, dtype=jnp.float32)
    denom = float(max(n_out - 1, 1))
    src = dst * (n_in - 1) / denom
    lo = jnp.clip(jnp.floor(src).astype(jnp.int32), 0, n_in - 1)
    hi = jnp.clip(lo + 1, 0, n_in - 1)
    frac = src - lo.astype(jnp.float32)
    return ((1.0 - frac)[:, None] * jax.nn.one_hot(lo, n_in, dtype=jnp.float32)
            + frac[:, None] * jax.nn.one_hot(hi, n_in, dtype=jnp.float32))


# ----------------------------------------------------------------------------
# Fused double_conv wrapper (single pallas_call)
# ----------------------------------------------------------------------------
def fused_double_conv(x2_nhwc, x1u_nhwc, params):
    """(conv3x3 pad1 -> BN -> ReLU) x 2 on concat([x2, x1u], channels), fused."""
    N, H, W, C2 = x2_nhwc.shape
    C1 = x1u_nhwc.shape[-1]
    Cm = params['w1'].shape[-1]
    Co = params['w2'].shape[-1]

    s1, b1 = _fold_bn(params['b1'], params['g1'], params['be1'], params['m1'], params['v1'])
    s2, b2 = _fold_bn(params['b2'], params['g2'], params['be2'], params['m2'], params['v2'])

    # Split conv1 along C_in so the channel concat never materializes in HBM:
    # the first C2 input channels act on x2 (torch.cat([x2, x1], dim=1) order).
    wt1 = jnp.concatenate(
        [_lowered_conv_weights(params['w1'][:, :, :C2, :], s1, W),
         _lowered_conv_weights(params['w1'][:, :, C2:, :], s1, W)],
        axis=1)                                                # (3, W*(C2+C1), W*Cm)
    wt2 = _lowered_conv_weights(params['w2'], s2, W)           # (3, W*Cm, W*Co)
    b1p = jnp.tile(b1, W).reshape(1, W * Cm)                   # lane-packed biases
    b2p = jnp.tile(b2, W).reshape(1, W * Co)

    # Lane-packed views (N, H, W*C): free reshapes, identical memory order.
    x2p = x2_nhwc.reshape(N, H, W * C2)
    x1p = x1u_nhwc.reshape(N, H, W * C1)

    kernel = functools.partial(_up_double_conv_kernel,
                               H=H, W=W, C2=C2, C1=C1, Cm=Cm, Co=Co)
    y = pl.pallas_call(
        kernel,
        out_shape=jax.ShapeDtypeStruct((N, H, W * Co), x2_nhwc.dtype),
        grid_spec=pltpu.PrefetchScalarGridSpec(
            num_scalar_prefetch=0,
            grid=(N,),
            in_specs=[
                pl.BlockSpec((1, H, W * C2), lambda n: (n, 0, 0)),
                pl.BlockSpec((1, H, W * C1), lambda n: (n, 0, 0)),
                pl.BlockSpec((3, W * (C2 + C1), W * Cm), lambda n: (0, 0, 0)),
                pl.BlockSpec((1, W * Cm), lambda n: (0, 0)),
                pl.BlockSpec((3, W * Cm, W * Co), lambda n: (0, 0, 0)),
                pl.BlockSpec((1, W * Co), lambda n: (0, 0)),
            ],
            out_specs=pl.BlockSpec((1, H, W * Co), lambda n: (n, 0, 0)),
            scratch_shapes=[
                pltpu.VMEM((H + 2, W * (C2 + C1)), jnp.float32),  # padded conv1 slab
                pltpu.VMEM((H + 2, W * Cm), jnp.float32),         # padded intermediate
            ],
        ),
        compiler_params=pltpu.CompilerParams(
            dimension_semantics=("parallel",),        # batch axis -> both TCs on v7x
            vmem_limit_bytes=32 * 1024 * 1024,
        ),
    )(x2p, x1p, wt1, b1p, wt2, b2p)
    return y.reshape(N, H, W, Co)


# ----------------------------------------------------------------------------
# `up` forward (bilinear=True). Inputs/outputs NCHW (PyTorch convention).
# ----------------------------------------------------------------------------
def up_forward(params, x1_nchw, x2_nchw):
    x1 = jnp.transpose(x1_nchw, (0, 2, 3, 1))   # -> NHWC
    x2 = jnp.transpose(x2_nchw, (0, 2, 3, 1))
    N, H1, W1, _ = x1.shape
    _, H2, W2, _ = x2.shape

    # TODO(synk): bilinear upsample + spatial pad kept as cheap JAX glue (two
    # tiny interpolation matmuls); could be folded into the kernel if needed.
    Mh = _interp_matrix(H1, 2 * H1)
    Mw = _interp_matrix(W1, 2 * W1)
    x1u = jnp.einsum('oh,nhwc->nowc', Mh, x1)
    x1u = jnp.einsum('pw,nowc->nopc', Mw, x1u)
    diffY = H2 - 2 * H1
    diffX = W2 - 2 * W1
    x1u = jnp.pad(x1u, ((0, 0),
                        (diffY // 2, diffY - diffY // 2),
                        (diffX // 2, diffX - diffX // 2),
                        (0, 0)))

    y = fused_double_conv(x2, x1u, params)       # concat + double_conv fused in Pallas
    return jnp.transpose(y, (0, 3, 1, 2))        # -> NCHW


# ----------------------------------------------------------------------------
# Pure-JAX reference (for correctness check)
# ----------------------------------------------------------------------------
def _ref_conv_bn_relu(x, w, conv_b, gamma, beta, mean, var, eps=1e-5):
    y = lax.conv_general_dilated(x, w, (1, 1), 'SAME',
                                 dimension_numbers=('NHWC', 'HWIO', 'NHWC'))
    y = y + conv_b
    y = (y - mean) / jnp.sqrt(var + eps) * gamma + beta
    return jnp.maximum(y, 0.0)


def up_forward_ref(params, x1_nchw, x2_nchw):
    x1 = jnp.transpose(x1_nchw, (0, 2, 3, 1))
    x2 = jnp.transpose(x2_nchw, (0, 2, 3, 1))
    _, H1, W1, _ = x1.shape
    _, H2, W2, _ = x2.shape
    Mh = _interp_matrix(H1, 2 * H1)
    Mw = _interp_matrix(W1, 2 * W1)
    x1u = jnp.einsum('oh,nhwc->nowc', Mh, x1)
    x1u = jnp.einsum('pw,nowc->nopc', Mw, x1u)
    diffY, diffX = H2 - 2 * H1, W2 - 2 * W1
    x1u = jnp.pad(x1u, ((0, 0), (diffY // 2, diffY - diffY // 2),
                        (diffX // 2, diffX - diffX // 2), (0, 0)))
    x = jnp.concatenate([x2, x1u], axis=-1)
    y = _ref_conv_bn_relu(x, params['w1'], params['b1'], params['g1'],
                          params['be1'], params['m1'], params['v1'])
    y = _ref_conv_bn_relu(y, params['w2'], params['b2'], params['g2'],
                          params['be2'], params['m2'], params['v2'])
    return jnp.transpose(y, (0, 3, 1, 2))


# ----------------------------------------------------------------------------
# Main
# ----------------------------------------------------------------------------
if __name__ == "__main__":
    key = jax.random.PRNGKey(0)
    ks = jax.random.split(key, 16)

    in_ch, out_ch = 8, 8          # double_conv(in_ch, out_ch); in_ch = C(x2) + C(x1_upsampled)
    N = 2
    # x1: low-res feature map, x2: skip connection (2x spatial of x1)
    x1 = jax.random.normal(ks[0], (N, in_ch // 2, 8, 8), jnp.float32)     # NCHW
    x2 = jax.random.normal(ks[1], (N, in_ch // 2, 16, 16), jnp.float32)   # NCHW

    params = {
        # conv1: in_ch -> out_ch, weights in HWIO
        'w1': jax.random.normal(ks[2], (3, 3, in_ch, out_ch), jnp.float32) * 0.1,
        'b1': jax.random.normal(ks[3], (out_ch,), jnp.float32) * 0.1,
        'g1': 1.0 + 0.1 * jax.random.normal(ks[4], (out_ch,), jnp.float32),
        'be1': 0.1 * jax.random.normal(ks[5], (out_ch,), jnp.float32),
        'm1': 0.1 * jax.random.normal(ks[6], (out_ch,), jnp.float32),
        'v1': jnp.abs(jax.random.normal(ks[7], (out_ch,), jnp.float32)) + 0.5,
        # conv2: out_ch -> out_ch
        'w2': jax.random.normal(ks[8], (3, 3, out_ch, out_ch), jnp.float32) * 0.1,
        'b2': jax.random.normal(ks[9], (out_ch,), jnp.float32) * 0.1,
        'g2': 1.0 + 0.1 * jax.random.normal(ks[10], (out_ch,), jnp.float32),
        'be2': 0.1 * jax.random.normal(ks[11], (out_ch,), jnp.float32),
        'm2': 0.1 * jax.random.normal(ks[12], (out_ch,), jnp.float32),
        'v2': jnp.abs(jax.random.normal(ks[13], (out_ch,), jnp.float32)) + 0.5,
    }

    out = jax.jit(up_forward)(params, x1, x2)
    out = jax.block_until_ready(out)

    ref = jax.block_until_ready(up_forward_ref(params, x1, x2))
    assert out.shape == (N, out_ch, 16, 16), out.shape
    assert jnp.allclose(out, ref, rtol=1e-4, atol=1e-4), float(jnp.max(jnp.abs(out - ref)))

    print("KERNEL_OK")
</pallas_src>

<mosaic_0001>
module attributes {stable_mosaic.version = 11 : i64} {
  func.func @_up_double_conv_kernel(%arg0: i32, %arg1: memref<1x16x64xf32, #tpu.memory_space<vmem>>, %arg2: memref<1x16x64xf32, #tpu.memory_space<vmem>>, %arg3: memref<3x128x128xf32, #tpu.memory_space<vmem>>, %arg4: memref<1x128xf32, #tpu.memory_space<vmem>>, %arg5: memref<3x128x128xf32, #tpu.memory_space<vmem>>, %arg6: memref<1x128xf32, #tpu.memory_space<vmem>>, %arg7: memref<1x16x128xf32, #tpu.memory_space<vmem>>, %arg8: memref<18x128xf32, #tpu.memory_space<vmem>>, %arg9: memref<18x128xf32, #tpu.memory_space<vmem>>) attributes {dimension_semantics = [#tpu.dimension_semantics<parallel>], iteration_bounds = array<i64: 2>, scalar_prefetch = 0 : i64, scratch_operands = 2 : i64, tpu.core_type = #tpu.core_type<tc>, window_params = [{transform_indices = @transform_0, window_bounds = array<i64: 1, 16, 64>}, {transform_indices = @transform_1, window_bounds = array<i64: 1, 16, 64>}, {pipeline_mode = #tpu.pipeline_mode<synchronous>, transform_indices = @transform_2, window_bounds = array<i64: 3, 128, 128>}, {pipeline_mode = #tpu.pipeline_mode<synchronous>, transform_indices = @transform_3, window_bounds = array<i64: 1, 128>}, {pipeline_mode = #tpu.pipeline_mode<synchronous>, transform_indices = @transform_4, window_bounds = array<i64: 3, 128, 128>}, {pipeline_mode = #tpu.pipeline_mode<synchronous>, transform_indices = @transform_5, window_bounds = array<i64: 1, 128>}, {transform_indices = @transform_6, window_bounds = array<i64: 1, 16, 128>}]} {
    %cst = arith.constant 0.000000e+00 : f32
    %0 = vector.broadcast %cst : f32 to vector<1x128xf32>
    %c0 = arith.constant 0 : index
    %c0_0 = arith.constant 0 : index
    %1 = vector.load %arg8[%c0, %c0_0] : memref<18x128xf32, #tpu.memory_space<vmem>>, vector<1x128xf32>
    tpu.vector_store %arg8[%c0, %c0_0], %0 {strides = array<i32>} : memref<18x128xf32, #tpu.memory_space<vmem>>, vector<1x128xf32>,
    %c17 = arith.constant 17 : index
    %c0_1 = arith.constant 0 : index
    %2 = vector.load %arg8[%c17, %c0_1] : memref<18x128xf32, #tpu.memory_space<vmem>>, vector<1x128xf32>
    tpu.vector_store %arg8[%c17, %c0_1], %0 {strides = array<i32>} : memref<18x128xf32, #tpu.memory_space<vmem>>, vector<1x128xf32>,
    %c0_2 = arith.constant 0 : index
    %c0_3 = arith.constant 0 : index
    %c0_4 = arith.constant 0 : index
    %3 = vector.load %arg1[%c0_2, %c0_3, %c0_4] : memref<1x16x64xf32, #tpu.memory_space<vmem>>, vector<1x16x64xf32>
    %4 = vector.shape_cast %3 : vector<1x16x64xf32> to vector<16x64xf32>
    %c0_5 = arith.constant 0 : index
    %c0_6 = arith.constant 0 : index
    %c0_7 = arith.constant 0 : index
    %5 = vector.load %arg2[%c0_5, %c0_6, %c0_7] : memref<1x16x64xf32, #tpu.memory_space<vmem>>, vector<1x16x64xf32>
    %6 = vector.shape_cast %5 : vector<1x16x64xf32> to vector<16x64xf32>
    %7 = tpu.concatenate %4, %6 in 1 : vector<16x64xf32>, vector<16x64xf32> -> vector<16x128xf32>
    %c1 = arith.constant 1 : index
    %c0_8 = arith.constant 0 : index
    %8 = vector.load %arg8[%c1, %c0_8] : memref<18x128xf32, #tpu.memory_space<vmem>>, vector<16x128xf32>
    tpu.vector_store %arg8[%c1, %c0_8], %7 {strides = array<i32>} : memref<18x128xf32, #tpu.memory_space<vmem>>, vector<16x128xf32>,
    %cst_9 = arith.constant 0.000000e+00 : f32
    %9 = vector.broadcast %cst_9 : f32 to vector<16x128xf32>
    %c0_10 = arith.constant 0 : index
    %c0_11 = arith.constant 0 : index
    %10 = vector.load %arg8[%c0_10, %c0_11] : memref<18x128xf32, #tpu.memory_space<vmem>>, vector<16x128xf32>
    %c0_12 = arith.constant 0 : index
    %c0_13 = arith.constant 0 : index
    %c0_14 = arith.constant 0 : index
    %11 = vector.load %arg3[%c0_12, %c0_13, %c0_14] : memref<3x128x128xf32, #tpu.memory_space<vmem>>, vector<1x128x128xf32>
    %12 = vector.shape_cast %11 : vector<1x128x128xf32> to vector<128x128xf32>
    %cst_15 = arith.constant dense<0.000000e+00> : vector<16x128xf32>
    %13 = tpu.matmul %10, %12, %cst_15 {dimension_numbers = #tpu.dot_dimension_numbers<[1], [0], [0], [1], [0, 0, 1, 1], [], []>} : vector<16x128xf32>, vector<128x128xf32>, vector<16x128xf32> -> vector<16x128xf32>
    %14 = arith.addf %9, %13 : vector<16x128xf32>
    %c1_16 = arith.constant 1 : index
    %c0_17 = arith.constant 0 : index
    %15 = vector.load %arg8[%c1_16, %c0_17] : memref<18x128xf32, #tpu.memory_space<vmem>>, vector<16x128xf32>
    %c1_18 = arith.constant 1 : index
    %c0_19 = arith.constant 0 : index
    %c0_20 = arith.constant 0 : index
    %16 = vector.load %arg3[%c1_18, %c0_19, %c0_20] : memref<3x128x128xf32, #tpu.memory_space<vmem>>, vector<1x128x128xf32>
    %17 = vector.shape_cast %16 : vector<1x128x128xf32> to vector<128x128xf32>
    %cst_21 = arith.constant dense<0.000000e+00> : vector<16x128xf32>
    %18 = tpu.matmul %15, %17, %cst_21 {dimension_numbers = #tpu.dot_dimension_numbers<[1], [0], [0], [1], [0, 0, 1, 1], [], []>} : vector<16x128xf32>, vector<128x128xf32>, vector<16x128xf32> -> vector<16x128xf32>
    %19 = arith.addf %14, %18 : vector<16x128xf32>
    %c2 = arith.constant 2 : index
    %c0_22 = arith.constant 0 : index
    %20 = vector.load %arg8[%c2, %c0_22] : memref<18x128xf32, #tpu.memory_space<vmem>>, vector<16x128xf32>
    %c2_23 = arith.constant 2 : index
    %c0_24 = arith.constant 0 : index
    %c0_25 = arith.constant 0 : index
    %21 = vector.load %arg3[%c2_23, %c0_24, %c0_25] : memref<3x128x128xf32, #tpu.memory_space<vmem>>, vector<1x128x128xf32>
    %22 = vector.shape_cast %21 : vector<1x128x128xf32> to vector<128x128xf32>
    %cst_26 = arith.constant dense<0.000000e+00> : vector<16x128xf32>
    %23 = tpu.matmul %20, %22, %cst_26 {dimension_numbers = #tpu.dot_dimension_numbers<[1], [0], [0], [1], [0, 0, 1, 1], [], []>} : vector<16x128xf32>, vector<128x128xf32>, vector<16x128xf32> -> vector<16x128xf32>
    %24 = arith.addf %19, %23 : vector<16x128xf32>
    %c0_27 = arith.constant 0 : index
    %c0_28 = arith.constant 0 : index
    %25 = vector.load %arg4[%c0_27, %c0_28] : memref<1x128xf32, #tpu.memory_space<vmem>>, vector<1x128xf32>
    %26 = vector.broadcast %25 : vector<1x128xf32> to vector<16x128xf32>
    %27 = arith.addf %24, %26 : vector<16x128xf32>
    %cst_29 = arith.constant 0.000000e+00 : f32
    %28 = vector.broadcast %cst_29 : f32 to vector<16x128xf32>
    %29 = arith.maximumf %27, %28 : vector<16x128xf32>
    %cst_30 = arith.constant 0.000000e+00 : f32
    %30 = vector.broadcast %cst_30 : f32 to vector<1x128xf32>
    %c0_31 = arith.constant 0 : index
    %c0_32 = arith.constant 0 : index
    %31 = vector.load %arg9[%c0_31, %c0_32] : memref<18x128xf32, #tpu.memory_space<vmem>>, vector<1x128xf32>
    tpu.vector_store %arg9[%c0_31, %c0_32], %30 {strides = array<i32>} : memref<18x128xf32, #tpu.memory_space<vmem>>, vector<1x128xf32>,
    %c17_33 = arith.constant 17 : index
    %c0_34 = arith.constant 0 : index
    %32 = vector.load %arg9[%c17_33, %c0_34] : memref<18x128xf32, #tpu.memory_space<vmem>>, vector<1x128xf32>
    tpu.vector_store %arg9[%c17_33, %c0_34], %30 {strides = array<i32>} : memref<18x128xf32, #tpu.memory_space<vmem>>, vector<1x128xf32>,
    %c1_35 = arith.constant 1 : index
    %c0_36 = arith.constant 0 : index
    %33 = vector.load %arg9[%c1_35, %c0_36] : memref<18x128xf32, #tpu.memory_space<vmem>>, vector<16x128xf32>
    tpu.vector_store %arg9[%c1_35, %c0_36], %29 {strides = array<i32>} : memref<18x128xf32, #tpu.memory_space<vmem>>, vector<16x128xf32>,
    %cst_37 = arith.constant 0.000000e+00 : f32
    %34 = vector.broadcast %cst_37 : f32 to vector<16x128xf32>
    %c0_38 = arith.constant 0 : index
    %c0_39 = arith.constant 0 : index
    %35 = vector.load %arg9[%c0_38, %c0_39] : memref<18x128xf32, #tpu.memory_space<vmem>>, vector<16x128xf32>
    %c0_40 = arith.constant 0 : index
    %c0_41 = arith.constant 0 : index
    %c0_42 = arith.constant 0 : index
    %36 = vector.load %arg5[%c0_40, %c0_41, %c0_42] : memref<3x128x128xf32, #tpu.memory_space<vmem>>, vector<1x128x128xf32>
    %37 = vector.shape_cast %36 : vector<1x128x128xf32> to vector<128x128xf32>
    %cst_43 = arith.constant dense<0.000000e+00> : vector<16x128xf32>
    %38 = tpu.matmul %35, %37, %cst_43 {dimension_numbers = #tpu.dot_dimension_numbers<[1], [0], [0], [1], [0, 0, 1, 1], [], []>} : vector<16x128xf32>, vector<128x128xf32>, vector<16x128xf32> -> vector<16x128xf32>
    %39 = arith.addf %34, %38 : vector<16x128xf32>
    %c1_44 = arith.constant 1 : index
    %c0_45 = arith.constant 0 : index
    %40 = vector.load %arg9[%c1_44, %c0_45] : memref<18x128xf32, #tpu.memory_space<vmem>>, vector<16x128xf32>
    %c1_46 = arith.constant 1 : index
    %c0_47 = arith.constant 0 : index
    %c0_48 = arith.constant 0 : index
    %41 = vector.load %arg5[%c1_46, %c0_47, %c0_48] : memref<3x128x128xf32, #tpu.memory_space<vmem>>, vector<1x128x128xf32>
    %42 = vector.shape_cast %41 : vector<1x128x128xf32> to vector<128x128xf32>
    %cst_49 = arith.constant dense<0.000000e+00> : vector<16x128xf32>
    %43 = tpu.matmul %40, %42, %cst_49 {dimension_numbers = #tpu.dot_dimension_numbers<[1], [0], [0], [1], [0, 0, 1, 1], [], []>} : vector<16x128xf32>, vector<128x128xf32>, vector<16x128xf32> -> vector<16x128xf32>
    %44 = arith.addf %39, %43 : vector<16x128xf32>
    %c2_50 = arith.constant 2 : index
    %c0_51 = arith.constant 0 : index
    %45 = vector.load %arg9[%c2_50, %c0_51] : memref<18x128xf32, #tpu.memory_space<vmem>>, vector<16x128xf32>
    %c2_52 = arith.constant 2 : index
    %c0_53 = arith.constant 0 : index
    %c0_54 = arith.constant 0 : index
    %46 = vector.load %arg5[%c2_52, %c0_53, %c0_54] : memref<3x128x128xf32, #tpu.memory_space<vmem>>, vector<1x128x128xf32>
    %47 = vector.shape_cast %46 : vector<1x128x128xf32> to vector<128x128xf32>
    %cst_55 = arith.constant dense<0.000000e+00> : vector<16x128xf32>
    %48 = tpu.matmul %45, %47, %cst_55 {dimension_numbers = #tpu.dot_dimension_numbers<[1], [0], [0], [1], [0, 0, 1, 1], [], []>} : vector<16x128xf32>, vector<128x128xf32>, vector<16x128xf32> -> vector<16x128xf32>
    %49 = arith.addf %44, %48 : vector<16x128xf32>
    %c0_56 = arith.constant 0 : index
    %c0_57 = arith.constant 0 : index
    %50 = vector.load %arg6[%c0_56, %c0_57] : memref<1x128xf32, #tpu.memory_space<vmem>>, vector<1x128xf32>
    %51 = vector.broadcast %50 : vector<1x128xf32> to vector<16x128xf32>
    %52 = arith.addf %49, %51 : vector<16x128xf32>
    %cst_58 = arith.constant 0.000000e+00 : f32
    %53 = vector.broadcast %cst_58 : f32 to vector<16x128xf32>
    %54 = arith.maximumf %52, %53 : vector<16x128xf32>
    %c0_59 = arith.constant 0 : index
    %c0_60 = arith.constant 0 : index
    %c0_61 = arith.constant 0 : index
    %55 = vector.load %arg7[%c0_59, %c0_60, %c0_61] : memref<1x16x128xf32, #tpu.memory_space<vmem>>, vector<1x16x128xf32>
    %56 = vector.shape_cast %55 : vector<1x16x128xf32> to vector<16x128xf32>
    %57 = vector.shape_cast %54 : vector<16x128xf32> to vector<1x16x128xf32>
    tpu.vector_store %arg7[%c0_59, %c0_60, %c0_61], %57 {strides = array<i32>} : memref<1x16x128xf32, #tpu.memory_space<vmem>>, vector<1x16x128xf32>,
    return
  }
  func.func @transform_0(%arg0: i32) -> (i32, i32, i32) {
    %c0_i32 = arith.constant 0 : i32
    %c0_i32_0 = arith.constant 0 : i32
    %c0_i32_1 = arith.constant 0 : i32
    return %arg0, %c0_i32, %c0_i32_0 : i32, i32, i32
  }
  func.func @transform_1(%arg0: i32) -> (i32, i32, i32) {
    %c0_i32 = arith.constant 0 : i32
    %c0_i32_0 = arith.constant 0 : i32
    %c0_i32_1 = arith.constant 0 : i32
    return %arg0, %c0_i32, %c0_i32_0 : i32, i32, i32
  }
  func.func @transform_2(%arg0: i32) -> (i32, i32, i32) {
    %c0_i32 = arith.constant 0 : i32
    %c0_i32_0 = arith.constant 0 : i32
    %c0_i32_1 = arith.constant 0 : i32
    %c0_i32_2 = arith.constant 0 : i32
    return %c0_i32, %c0_i32_0, %c0_i32_1 : i32, i32, i32
  }
  func.func @transform_3(%arg0: i32) -> (i32, i32) {
    %c0_i32 = arith.constant 0 : i32
    %c0_i32_0 = arith.constant 0 : i32
    %c0_i32_1 = arith.constant 0 : i32
    return %c0_i32, %c0_i32_0 : i32, i32
  }
  func.func @transform_4(%arg0: i32) -> (i32, i32, i32) {
    %c0_i32 = arith.constant 0 : i32
    %c0_i32_0 = arith.constant 0 : i32
    %c0_i32_1 = arith.constant 0 : i32
    %c0_i32_2 = arith.constant 0 : i32
    return %c0_i32, %c0_i32_0, %c0_i32_1 : i32, i32, i32
  }
  func.func @transform_5(%arg0: i32) -> (i32, i32) {
    %c0_i32 = arith.constant 0 : i32
    %c0_i32_0 = arith.constant 0 : i32
    %c0_i32_1 = arith.constant 0 : i32
    return %c0_i32, %c0_i32_0 : i32, i32
  }
  func.func @transform_6(%arg0: i32) -> (i32, i32, i32) {
    %c0_i32 = arith.constant 0 : i32
    %c0_i32_0 = arith.constant 0 : i32
    %c0_i32_1 = arith.constant 0 : i32
    return %arg0, %c0_i32, %c0_i32_0 : i32, i32, i32
  }
}

</mosaic_0001>

<llo_original>
// kernel: tile.13
$region0: #{tile.13}
  #allocation0 [shape = 's32[1]{0}', space=sflag, size = 0x4, scoped, tag = 'scoped memory for tile.13']
  %s0 = inlined_call_operand.vmem [shape: f32[8], index: 0, kind: input, shape index: {}]
  %s1 = inlined_call_operand.vmem [shape: f32[16,8], index: 1, kind: output, shape index: {}]
  // Predicated region
  $region2: #{tile.13} parent=0 // pred_check
    _
  $region3: #{tile.13} parent=0 // pred_check_branch
    %3 = sbr.rel (0) target = $region5
  $region4: #{tile.13} parent=0 // pred_region
    _
  $region5: #{tile.13} parent=0 // pred_fallthru
    _
  %v4 = vld [vmem:[%s0] ss:$0 sm:$0xff]
  %5 = vst [vmem:[%s1] sm:$0xff] %v4
  %s6 = scalar_lea.vmem %s1, 8
  %7 = vst [vmem:[%s6] sm:$0xff] %v4

// kernel: tile.14
$region0: #{tile.14}
  %s0 = inlined_call_operand.vmem [shape: f32[16,8], index: 0, kind: input, shape index: {}]
  %s1 = inlined_call_operand.vmem [shape: f32[1,128], index: 1, kind: output, shape index: {}]
  $region1: #{tile.14} parent=0
    #allocation0 [shape = 'u8[4096]{0}', space=vmem, size = 0x1000, scoped, tag = 'scoped mem for output reshape']
    %v2 = vld [vmem:[%s0] sm:$0x1]
    %vm3 = vcmask 64512
    %4 = vst.msk [vmem:[#allocation0] sm:$0x1] %vm3, %v2
    %s5 = scalar_lea.vmem %s0, 15
    %v6 = vld [vmem:[%s5] sm:$0x1]
    %7 = vrot.lane.b32.xlu0 %v6, 120
    %v8 = vpop.permute.xlu0 %7
    %vm9 = vcmask 1048512
    %10 = vst.msk [vmem:[#allocation0] sm:$0x1] %vm9, %v8
    %s11 = scalar_lea.vmem %s0, 14
    %v12 = vld [vmem:[%s11] sm:$0x1]
    %13 = vrot.lane.b32.xlu0 %v12, 112
    %v14 = vpop.permute.xlu0 %13
    %vm15 = vcmask 982912
    %16 = vst.msk [vmem:[#allocation0] sm:$0x1] %vm15, %v14
    %s17 = scalar_lea.vmem %s0, 13
    %v18 = vld [vmem:[%s17] sm:$0x1]
    %19 = vrot.lane.b32.xlu0 %v18, 104
    %v20 = vpop.permute.xlu0 %19
    %vm21 = vcmask 917312
    %22 = vst.msk [vmem:[#allocation0] sm:$0x1] %vm21, %v20
    %s23 = scalar_lea.vmem %s0, 12
    %v24 = vld [vmem:[%s23] sm:$0x1]
    %25 = vrot.lane.b32.xlu0 %v24, 96
    %v26 = vpop.permute.xlu0 %25
    %vm27 = vcmask 851712
    %28 = vst.msk [vmem:[#allocation0] sm:$0x1] %vm27, %v26
    %s29 = scalar_lea.vmem %s0, 11
    %v30 = vld [vmem:[%s29] sm:$0x1]
    %31 = vrot.lane.b32.xlu0 %v30, 88
    %v32 = vpop.permute.xlu0 %31
    %vm33 = vcmask 786112
    %34 = vst.msk [vmem:[#allocation0] sm:$0x1] %vm33, %v32
    %s35 = scalar_lea.vmem %s0, 10
    %v36 = vld [vmem:[%s35] sm:$0x1]
    %37 = vrot.lane.b32.xlu0 %v36, 80
    %v38 = vpop.permute.xlu0 %37
    %vm39 = vcmask 720512
    %40 = vst.msk [vmem:[#allocation0] sm:$0x1] %vm39, %v38
    %s41 = scalar_lea.vmem %s0, 9
    %v42 = vld [vmem:[%s41] sm:$0x1]
    %43 = vrot.lane.b32.xlu0 %v42, 72
    %v44 = vpop.permute.xlu0 %43
    %vm45 = vcmask 654912
    %46 = vst.msk [vmem:[#allocation0] sm:$0x1] %vm45, %v44
    %s47 = scalar_lea.vmem %s0, 8
    %v48 = vld [vmem:[%s47] sm:$0x1]
    %49 = vrot.lane.b32.xlu0 %v48, 64
    %v50 = vpop.permute.xlu0 %49
    %vm51 = vcmask 589312
    %52 = vst.msk [vmem:[#allocation0] sm:$0x1] %vm51, %v50
    %s53 = scalar_lea.vmem %s0, 7
    %v54 = vld [vmem:[%s53] sm:$0x1]
    %55 = vrot.lane.b32.xlu0 %v54, 56
    %v56 = vpop.permute.xlu0 %55
    %vm57 = vcmask 523712
    %58 = vst.msk [vmem:[#allocation0] sm:$0x1] %vm57, %v56
    %s59 = scalar_lea.vmem %s0, 6
    %v60 = vld [vmem:[%s59] sm:$0x1]
    %61 = vrot.lane.b32.xlu0 %v60, 48
    %v62 = vpop.permute.xlu0 %61
    %vm63 = vcmask 458112
    %64 = vst.msk [vmem:[#allocation0] sm:$0x1] %vm63, %v62
    %s65 = scalar_lea.vmem %s0, 5
    %v66 = vld [vmem:[%s65] sm:$0x1]
    %67 = vrot.lane.b32.xlu0 %v66, 40
    %v68 = vpop.permute.xlu0 %67
    %vm69 = vcmask 392512
    %70 = vst.msk [vmem:[#allocation0] sm:$0x1] %vm69, %v68
    %s71 = scalar_lea.vmem %s0, 4
    %v72 = vld [vmem:[%s71] sm:$0x1]
    %73 = vrot.lane.b32.xlu0 %v72, 32
    %v74 = vpop.permute.xlu0 %73
    %vm75 = vcmask 326912
    %76 = vst.msk [vmem:[#allocation0] sm:$0x1] %vm75, %v74
    %s77 = scalar_lea.vmem %s0, 3
    %v78 = vld [vmem:[%s77] sm:$0x1]
    %79 = vrot.lane.b32.xlu0 %v78, 24
    %v80 = vpop.permute.xlu0 %79
    %vm81 = vcmask 261312
    %82 = vst.msk [vmem:[#allocation0] sm:$0x1] %vm81, %v80
    %s83 = scalar_lea.vmem %s0, 2
    %v84 = vld [vmem:[%s83] sm:$0x1]
    %85 = vrot.lane.b32.xlu0 %v84, 16
    %v86 = vpop.permute.xlu0 %85
    %vm87 = vcmask 195712
    %88 = vst.msk [vmem:[#allocation0] sm:$0x1] %vm87, %v86
    %s89 = scalar_lea.vmem %s0, 1
    %v90 = vld [vmem:[%s89] sm:$0x1]
    %91 = vrot.lane.b32.xlu0 %v90, 8
    %v92 = vpop.permute.xlu0 %91
    %vm93 = vcmask 130112
    %94 = vst.msk [vmem:[#allocation0] sm:$0x1] %vm93, %v92
    %s96 = ssub.s32 2, 1
    %v97 = vld [vmem:[#allocation0] sm:%s96]
    %s99 = ssub.s32 2, 1
    %100 = vst [vmem:[%s1] sm:%s99] %v97

// kernel: up_forward.1
$region0: #{up_forward.1}
  #allocation0 [shape = 'u32[]', space=smem, size = 0x4, offset = 0x4, fixed_abs, tag = 'smem constant byte address 0x4 - core index']
  #allocation1 [shape = 'u32[72,128]{1,0:T(1,128)}', space=vmem, size = 0x9000, scoped, tag = 'internal scratch']
  #allocation2 [shape = 'f32[18,128]{1,0:T(8,128)}', space=vmem, size = 0x3000, scoped, tag = 'scratch operand']
  #allocation3 [shape = 'f32[18,128]{1,0:T(8,128)}', space=vmem, size = 0x3000, scoped, tag = 'scratch operand']
  %s0 = inlined_call_operand.vmem [shape: f32[2,16,64], index: 0, kind: input, shape index: {}]
  %s1 = inlined_call_operand.vmem [shape: f32[2,16,64], index: 1, kind: input, shape index: {}]
  %s2 = inlined_call_operand.vmem [shape: f32[3,128,128], index: 2, kind: input, shape index: {}]
  %s3 = inlined_call_operand.vmem [shape: f32[1,128], index: 3, kind: input, shape index: {}]
  %s4 = inlined_call_operand.vmem [shape: f32[3,128,128], index: 4, kind: input, shape index: {}]
  %s5 = inlined_call_operand.vmem [shape: f32[1,128], index: 5, kind: input, shape index: {}]
  %s6 = inlined_call_operand.vmem [shape: f32[2,16,128], index: 6, kind: output, shape index: {}]
  %s7 = sld [smem:[#allocation0]]
  $region57: #{up_forward.1} parent=0
    _
  %s9 = ssub.s32 1, %s7
  %s10 = scalar_select 0, %s9, %s7
  loop: start=0, step=1, limit=4
  $region2: #{up_forward.1} parent=0 // loop_pre_header
    _
  $region3: #{up_forward.1} parent=0 // loop_header
    %s12 = sphi 0, %s16
    %p13 = scmp.ge.s32.totalorder %s12, 4
    %s22 = sphi 0, %s24
    %s25 = sphi 0, %s22
    %s26 = sphi 0, %s25
    %s42 = sphi 0, %s26
    %s48 = sphi 0, %s50
    %s51 = sphi 0, %s48
    %s52 = sphi 0, %s51
    %s68 = sphi 0, %s52
    %s72 = sphi 0, %s72
    %s74 = sphi 0, %s72
    %s75 = sphi 0, %s74
    %s89 = sphi 0, %s75
    %s93 = sphi 0, %s93
    %s95 = sphi 0, %s93
    %s96 = sphi 0, %s95
    %s110 = sphi 0, %s96
    %s114 = sphi 0, %s114
    %s116 = sphi 0, %s114
    %s117 = sphi 0, %s116
    %s131 = sphi 0, %s117
    %s135 = sphi 0, %s135
    %s137 = sphi 0, %s135
    %s138 = sphi 0, %s137
    %s152 = sphi 0, %s138
    %s158 = sphi 0, %s160
    %s161 = sphi 0, %s158
    %s162 = sphi 0, %s161
    %s178 = sphi 0, %s162
  $region4: #{up_forward.1} parent=0 // loop_header_branch
    %15 = sbr.rel (%p13) target = $region8
  $region5: #{up_forward.1} parent=0 // loop_body
    %s17 = ssub.s32 %s12, 1
    %s18 = ssub.s32 %s12, 2
    %s19 = sadd.s32 %s12, 1
    %s20 = ssub.s32 %s12, %s19
    %p21 = scmp.eq.s32.totalorder %s20, 0
    %s23 = sadd.s32 %s22, 1
    %s24 = scalar_select %p21, %s22, %s23
    %p27 = pneg %p21
    %p28 = scmp.eq.s32.totalorder %s12, 1
    %p29 = por %p27, %p28
    %p30 = scmp.ne.s32.totalorder %s22, %s25
    %p31 = scmp.eq.s32.totalorder %s12, 0
    %p32 = por %p30, %p31
    %p33 = scmp.ne.s32.totalorder %s22, %s25
    %p34 = scmp.eq.s32.totalorder %s17, 1
    %p35 = por %p33, %p34
    %p36 = scmp.ne.s32.totalorder %s25, %s26
    %p37 = scmp.eq.s32.totalorder %s17, 0
    %p38 = por %p36, %p37
    %p39 = scmp.ne.s32.totalorder %s25, %s26
    %p40 = scmp.eq.s32.totalorder %s18, 1
    %p41 = por %p39, %p40
    %p43 = scmp.ne.s32.totalorder %s26, %s42
    %p44 = scmp.eq.s32.totalorder %s18, 0
    %p45 = por %p43, %p44
    %s46 = ssub.s32 %s12, %s19
    %p47 = scmp.eq.s32.totalorder %s46, 0
    %s49 = sadd.s32 %s48, 1
    %s50 = scalar_select %p47, %s48, %s49
    %p53 = pneg %p47
    %p54 = scmp.eq.s32.totalorder %s12, 1
    %p55 = por %p53, %p54
    %p56 = scmp.ne.s32.totalorder %s48, %s51
    %p57 = scmp.eq.s32.totalorder %s12, 0
    %p58 = por %p56, %p57
    %p59 = scmp.ne.s32.totalorder %s48, %s51
    %p60 = scmp.eq.s32.totalorder %s17, 1
    %p61 = por %p59, %p60
    %p62 = scmp.ne.s32.totalorder %s51, %s52
    %p63 = scmp.eq.s32.totalorder %s17, 0
    %p64 = por %p62, %p63
    %p65 = scmp.ne.s32.totalorder %s51, %s52
    %p66 = scmp.eq.s32.totalorder %s18, 1
    %p67 = por %p65, %p66
    %p69 = scmp.ne.s32.totalorder %s52, %s68
    %p70 = scmp.eq.s32.totalorder %s18, 0
    %p71 = por %p69, %p70
    %s73 = sadd.s32 %s72, 1
    %p76 = scmp.eq.s32.totalorder %s12, 1
    %p77 = scmp.ne.s32.totalorder %s72, %s74
    %p78 = scmp.eq.s32.totalorder %s12, 0
    %p79 = por %p77, %p78
    %p80 = scmp.ne.s32.totalorder %s72, %s74
    %p81 = scmp.eq.s32.totalorder %s17, 1
    %p82 = por %p80, %p81
    %p83 = scmp.ne.s32.totalorder %s74, %s75
    %p84 = scmp.eq.s32.totalorder %s17, 0
    %p85 = por %p83, %p84
    %p86 = scmp.ne.s32.totalorder %s74, %s75
    %p87 = scmp.eq.s32.totalorder %s18, 1
    %p88 = por %p86, %p87
    %p90 = scmp.ne.s32.totalorder %s75, %s89
    %p91 = scmp.eq.s32.totalorder %s18, 0
    %p92 = por %p90, %p91
    %s94 = sadd.s32 %s93, 1
    %p97 = scmp.eq.s32.totalorder %s12, 1
    %p98 = scmp.ne.s32.totalorder %s93, %s95
    %p99 = scmp.eq.s32.totalorder %s12, 0
    %p100 = por %p98, %p99
    %p101 = scmp.ne.s32.totalorder %s93, %s95
    %p102 = scmp.eq.s32.totalorder %s17, 1
    %p103 = por %p101, %p102
    %p104 = scmp.ne.s32.totalorder %s95, %s96
    %p105 = scmp.eq.s32.totalorder %s17, 0
    %p106 = por %p104, %p105
    %p107 = scmp.ne.s32.totalorder %s95, %s96
    %p108 = scmp.eq.s32.totalorder %s18, 1
    %p109 = por %p107, %p108
    %p111 = scmp.ne.s32.totalorder %s96, %s110
    %p112 = scmp.eq.s32.totalorder %s18, 0
    %p113 = por %p111, %p112
    %s115 = sadd.s32 %s114, 1
    %p118 = scmp.eq.s32.totalorder %s12, 1
    %p119 = scmp.ne.s32.totalorder %s114, %s116
    %p120 = scmp.eq.s32.totalorder %s12, 0
    %p121 = por %p119, %p120
    %p122 = scmp.ne.s32.totalorder %s114, %s116
    %p123 = scmp.eq.s32.totalorder %s17, 1
    %p124 = por %p122, %p123
    %p125 = scmp.ne.s32.totalorder %s116, %s117
    %p126 = scmp.eq.s32.totalorder %s17, 0
    %p127 = por %p125, %p126
    %p128 = scmp.ne.s32.totalorder %s116, %s117
    %p129 = scmp.eq.s32.totalorder %s18, 1
    %p130 = por %p128, %p129
    %p132 = scmp.ne.s32.totalorder %s117, %s131
    %p133 = scmp.eq.s32.totalorder %s18, 0
    %p134 = por %p132, %p133
    %s136 = sadd.s32 %s135, 1
    %p139 = scmp.eq.s32.totalorder %s12, 1
    %p140 = scmp.ne.s32.totalorder %s135, %s137
    %p141 = scmp.eq.s32.totalorder %s12, 0
    %p142 = por %p140, %p141
    %p143 = scmp.ne.s32.totalorder %s135, %s137
    %p144 = scmp.eq.s32.totalorder %s17, 1
    %p145 = por %p143, %p144
    %p146 = scmp.ne.s32.totalorder %s137, %s138
    %p147 = scmp.eq.s32.totalorder %s17, 0
    %p148 = por %p146, %p147
    %p149 = scmp.ne.s32.totalorder %s137, %s138
    %p150 = scmp.eq.s32.totalorder %s18, 1
    %p151 = por %p149, %p150
    %p153 = scmp.ne.s32.totalorder %s138, %s152
    %p154 = scmp.eq.s32.totalorder %s18, 0
    %p155 = por %p153, %p154
    %s156 = ssub.s32 %s12, %s19
    %p157 = scmp.eq.s32.totalorder %s156, 0
    %s159 = sadd.s32 %s158, 1
    %s160 = scalar_select %p157, %s158, %s159
    %p163 = pneg %p157
    %p164 = scmp.eq.s32.totalorder %s12, 1
    %p165 = por %p163, %p164
    %p166 = scmp.ne.s32.totalorder %s158, %s161
    %p167 = scmp.eq.s32.totalorder %s12, 0
    %p168 = por %p166, %p167
    %p169 = scmp.ne.s32.totalorder %s158, %s161
    %p170 = scmp.eq.s32.totalorder %s17, 1
    %p171 = por %p169, %p170
    %p172 = scmp.ne.s32.totalorder %s161, %s162
    %p173 = scmp.eq.s32.totalorder %s17, 0
    %p174 = por %p172, %p173
    %p175 = scmp.ne.s32.totalorder %s161, %s162
    %p176 = scmp.eq.s32.totalorder %s18, 1
    %p177 = por %p175, %p176
    %p179 = scmp.ne.s32.totalorder %s162, %s178
    %p180 = scmp.eq.s32.totalorder %s18, 0
    %p181 = por %p179, %p180
    %p182 = scmp.le.s32.totalorder 1, %s12
    %p183 = scmp.lt.s32.totalorder %s12, 3
    %p184 = pnand %p182, %p183
    %p185 = pneg %p184
    // Predicated region
    $region9: #{up_forward.1} parent=5 // pred_check
      _
    $region10: #{up_forward.1} parent=5 // pred_check_branch
      %187 = sbr.rel (%p184) target = $region12
    $region11: #{up_forward.1} parent=5 // pred_region
      %s188 = ssub.s32 %s12, 1
      // Predicated region
      $region13: #{up_forward.1} parent=11 // pred_check
        %p189 = pneg %p85
      $region14: #{up_forward.1} parent=11 // pred_check_branch
        %191 = sbr.rel (%p189) target = $region16
      $region15: #{up_forward.1} parent=11 // pred_region
        _
      $region16: #{up_forward.1} parent=11 // pred_fallthru
        _
      // Predicated region
      $region17: #{up_forward.1} parent=11 // pred_check
        %p192 = pneg %p106
      $region18: #{up_forward.1} parent=11 // pred_check_branch
        %194 = sbr.rel (%p192) target = $region20
      $region19: #{up_forward.1} parent=11 // pred_region
        _
      $region20: #{up_forward.1} parent=11 // pred_fallthru
        _
      // Predicated region
      $region21: #{up_forward.1} parent=11 // pred_check
        %p195 = pneg %p127
      $region22: #{up_forward.1} parent=11 // pred_check_branch
        %197 = sbr.rel (%p195) target = $region24
      $region23: #{up_forward.1} parent=11 // pred_region
        _
      $region24: #{up_forward.1} parent=11 // pred_fallthru
        _
      // Predicated region
      $region25: #{up_forward.1} parent=11 // pred_check
        %p198 = pneg %p148
      $region26: #{up_forward.1} parent=11 // pred_check_branch
        %200 = sbr.rel (%p198) target = $region28
      $region27: #{up_forward.1} parent=11 // pred_region
        _
      $region28: #{up_forward.1} parent=11 // pred_fallthru
        _
    $region12: #{up_forward.1} parent=5 // pred_fallthru
      _
    %p201 = scmp.lt.s32.totalorder %s12, 2
    // Predicated region
    $region29: #{up_forward.1} parent=5 // pred_check
      %p202 = pneg %p201
    $region30: #{up_forward.1} parent=5 // pred_check_branch
      %204 = sbr.rel (%p202) target = $region32
    $region31: #{up_forward.1} parent=5 // pred_region
      // Predicated region
      $region33: #{up_forward.1} parent=31 // pred_check
        %p205 = pneg %p32
      $region34: #{up_forward.1} parent=31 // pred_check_branch
        %207 = sbr.rel (%p205) target = $region36
      $region35: #{up_forward.1} parent=31 // pred_region
        %p208 = scmp.lt.s32.totalorder %s12, 1
        %s209 = scalar_select %p208, %s12, 1
        %s210 = smul.addr %s209, 2
        %s211 = smul.addr %s210, 8
        %s212 = scalar_lea.vmem %s0, %s211
      $region36: #{up_forward.1} parent=31 // pred_fallthru
        _
      // Predicated region
      $region37: #{up_forward.1} parent=31 // pred_check
        %p213 = pneg %p58
      $region38: #{up_forward.1} parent=31 // pred_check_branch
        %215 = sbr.rel (%p213) target = $region40
      $region39: #{up_forward.1} parent=31 // pred_region
        %p216 = scmp.lt.s32.totalorder %s12, 1
        %s217 = scalar_select %p216, %s12, 1
        %s218 = smul.addr %s217, 2
        %s219 = smul.addr %s218, 8
        %s220 = scalar_lea.vmem %s1, %s219
      $region40: #{up_forward.1} parent=31 // pred_fallthru
        _
    $region32: #{up_forward.1} parent=5 // pred_fallthru
      _
    %p221 = scmp.le.s32.totalorder 1, %s12
    %p222 = scmp.lt.s32.totalorder %s12, 3
    %p223 = pnand %p221, %p222
    %p224 = pneg %p223
    // Predicated region
    $region41: #{up_forward.1} parent=5 // pred_check
      _
    $region42: #{up_forward.1} parent=5 // pred_check_branch
      %226 = sbr.rel (%p223) target = $region44
    $region43: #{up_forward.1} parent=5 // pred_region
      %s227 = ssub.s32 %s12, 1
      %p228 = scmp.lt.s32.totalorder %s17, 1
      %s229 = scalar_select %p228, %s17, 1
      %s230 = smul.addr %s229, 2
      %s231 = smul.addr %s230, 8
      %s232 = scalar_lea.vmem %s0, %s231
      %p233 = pneg %p38
      %p234 = pneg %p35
      %p235 = scmp.lt.s32.totalorder %s17, 1
      %s236 = scalar_select %p235, %s17, 1
      %s237 = smul.addr %s236, 2
      %s238 = smul.addr %s237, 8
      %s239 = scalar_lea.vmem %s1, %s238
      %p240 = pneg %p64
      %p241 = pneg %p61
      %p242 = pneg %p85
      %p243 = pneg %p82
      %p244 = pneg %p106
      %p245 = pneg %p103
      %p246 = pneg %p127
      %p247 = pneg %p124
      %p248 = pneg %p148
      %p249 = pneg %p145
      %p250 = pneg %p174
      %p251 = pneg %p171
      %p252 = scmp.lt.s32.totalorder %s17, 1
      %s253 = scalar_select %p252, %s17, 1
      %s254 = smul.addr %s253, 2
      %s255 = smul.addr %s254, 8
      %s256 = scalar_lea.vmem %s6, %s255
      %p257 = scmp.lt.s32.totalorder %s17, 1
      %s258 = scalar_select %p257, %s17, 1
      %s259 = smul.addr %s258, 2
      %s260 = smul.addr %s259, 8
      %s261 = scalar_lea.vmem %s0, %s260
      %p262 = scmp.lt.s32.totalorder %s17, 1
      %s263 = scalar_select %p262, %s17, 1
      %s264 = smul.addr %s263, 2
      %s265 = smul.addr %s264, 8
      %s266 = scalar_lea.vmem %s1, %s265
      %p267 = scmp.lt.s32.totalorder %s17, 1
      %s268 = scalar_select %p267, %s17, 1
      %s269 = smul.addr %s268, 2
      %s270 = smul.addr %s269, 8
      %s271 = scalar_lea.vmem %s6, %s270
      %272 = vst [vmem:[#allocation2] sm:$0x1] 0.0
      %273 = vst [vmem:[#allocation2 + $0x11] sm:$0x1] 0.0
      %v274 = vld [vmem:[%s261] sm:$0xff]
      %v275 = vld [vmem:[%s261 + $0x8] sm:$0xff]
      %v276 = vld [vmem:[%s266] sm:$0xff]
      %v277 = vld [vmem:[%s266 + $0x8] sm:$0xff]
      %280 = vrot.lane.b32.xlu0 %v276, 64
      %v281 = vpop.permute.xlu0 %280
      %282 = vrot.lane.b32.xlu0 %v277, 64
      %v283 = vpop.permute.xlu0 %282
      %vm286 = vcmask 523264
      %v287 = vsel %vm286, %v274, %v281
      %v288 = vsel %vm286, %v275, %v283
      %289 = vst [vmem:[#allocation2 + $0x1] sm:$0xff] %v287
      %290 = vst [vmem:[#allocation2 + $0x9] sm:$0xff] %v288
      %v291 = vld [vmem:[#allocation2] sm:$0xff]
      %v292 = vld [vmem:[#allocation2 + $0x8] sm:$0xff]
      %v293 = vld [vmem:[%s2] sm:$0xff]
      %v294 = vld [vmem:[%s2 + $0x8] sm:$0xff]
      %v295 = vld [vmem:[%s2 + $0x10] sm:$0xff]
      %v296 = vld [vmem:[%s2 + $0x18] sm:$0xff]
      %v297 = vld [vmem:[%s2 + $0x20] sm:$0xff]
      %v298 = vld [vmem:[%s2 + $0x28] sm:$0xff]
      %v299 = vld [vmem:[%s2 + $0x30] sm:$0xff]
      %v300 = vld [vmem:[%s2 + $0x38] sm:$0xff]
      %v301 = vld [vmem:[%s2 + $0x40] sm:$0xff]
      %v302 = vld [vmem:[%s2 + $0x48] sm:$0xff]
      %v303 = vld [vmem:[%s2 + $0x50] sm:$0xff]
      %v304 = vld [vmem:[%s2 + $0x58] sm:$0xff]
      %v305 = vld [vmem:[%s2 + $0x60] sm:$0xff]
      %v306 = vld [vmem:[%s2 + $0x68] sm:$0xff]
      %v307 = vld [vmem:[%s2 + $0x70] sm:$0xff]
      %v308 = vld [vmem:[%s2 + $0x78] sm:$0xff]
      %v309 = vld [vmem:[#allocation2 + $0x1] sm:$0xff]
      %v310 = vld [vmem:[#allocation2 + $0x9] sm:$0xff]
      %s311 = scalar_lea.vmem %s2, 128
      %v312 = vld [vmem:[%s311] sm:$0xff]
      %v313 = vld [vmem:[%s311 + $0x8] sm:$0xff]
      %v314 = vld [vmem:[%s311 + $0x10] sm:$0xff]
      %v315 = vld [vmem:[%s311 + $0x18] sm:$0xff]
      %v316 = vld [vmem:[%s311 + $0x20] sm:$0xff]
      %v317 = vld [vmem:[%s311 + $0x28] sm:$0xff]
      %v318 = vld [vmem:[%s311 + $0x30] sm:$0xff]
      %v319 = vld [vmem:[%s311 + $0x38] sm:$0xff]
      %v320 = vld [vmem:[%s311 + $0x40] sm:$0xff]
      %v321 = vld [vmem:[%s311 + $0x48] sm:$0xff]
      %v322 = vld [vmem:[%s311 + $0x50] sm:$0xff]
      %v323 = vld [vmem:[%s311 + $0x58] sm:$0xff]
      %v324 = vld [vmem:[%s311 + $0x60] sm:$0xff]
      %v325 = vld [vmem:[%s311 + $0x68] sm:$0xff]
      %v326 = vld [vmem:[%s311 + $0x70] sm:$0xff]
      %v327 = vld [vmem:[%s311 + $0x78] sm:$0xff]
      %328 = vmatpush.msra.mxu0 %v327
      %329 = vmatpush.msra.mxu0 %v326
      %330 = vmatpush.msra.mxu0 %v325
      %331 = vmatpush.msra.mxu0 %v324
      %332 = vmatpush.msra.mxu0 %v323
      %333 = vmatpush.msra.mxu0 %v322
      %334 = vmatpush.msra.mxu0 %v321
      %335 = vmatpush.msra.mxu0 %v320
      %336 = vmatpush.msra.mxu0 %v319
      %337 = vmatpush.msra.mxu0 %v318
      %338 = vmatpush.msra.mxu0 %v317
      %339 = vmatpush.msra.mxu0 %v316
      %340 = vmatpush.msra.mxu0 %v315
      %341 = vmatpush.msra.mxu0 %v314
      %342 = vmatpush.msra.mxu0 %v313
      %343 = vmatpush.msra.mxu0 %v312
      %344 = vmatmul.f32.gmra.mxu0 %v309
      %v345 = vpop.f32.mrf.mxu0
      %v346 = vadd.f32 0.0, %v345
      %347 = vmatmul.f32.gmra.mxu0 %v310
      %v348 = vpop.f32.mrf.mxu0
      %v349 = vadd.f32 0.0, %v348
      %350 = vdwg.mxu0
      %351 = vmatpush.msra.mxu0 %v308
      %352 = vmatpush.msra.mxu0 %v307
      %353 = vmatpush.msra.mxu0 %v306
      %354 = vmatpush.msra.mxu0 %v305
      %355 = vmatpush.msra.mxu0 %v304
      %356 = vmatpush.msra.mxu0 %v303
      %357 = vmatpush.msra.mxu0 %v302
      %358 = vmatpush.msra.mxu0 %v301
      %359 = vmatpush.msra.mxu0 %v300
      %360 = vmatpush.msra.mxu0 %v299
      %361 = vmatpush.msra.mxu0 %v298
      %362 = vmatpush.msra.mxu0 %v297
      %363 = vmatpush.msra.mxu0 %v296
      %364 = vmatpush.msra.mxu0 %v295
      %365 = vmatpush.msra.mxu0 %v294
      %366 = vmatpush.msra.mxu0 %v293
      %367 = vmatmul.f32.gmra.mxu0 %v291
      %v368 = vpop.f32.mrf.mxu0
      %v369 = vadd.f32 %v346, %v368
      %370 = vmatmul.f32.gmra.mxu0 %v292
      %v371 = vpop.f32.mrf.mxu0
      %v372 = vadd.f32 %v349, %v371
      %373 = vdwg.mxu0
      %v374 = vld [vmem:[#allocation2 + $0x2] sm:$0xff]
      %v375 = vld [vmem:[#allocation2 + $0xa] sm:$0xff]
      %s376 = scalar_lea.vmem %s2, 256
      %v377 = vld [vmem:[%s376] sm:$0xff]
      %v378 = vld [vmem:[%s376 + $0x8] sm:$0xff]
      %v379 = vld [vmem:[%s376 + $0x10] sm:$0xff]
      %v380 = vld [vmem:[%s376 + $0x18] sm:$0xff]
      %v381 = vld [vmem:[%s376 + $0x20] sm:$0xff]
      %v382 = vld [vmem:[%s376 + $0x28] sm:$0xff]
      %v383 = vld [vmem:[%s376 + $0x30] sm:$0xff]
      %v384 = vld [vmem:[%s376 + $0x38] sm:$0xff]
      %v385 = vld [vmem:[%s376 + $0x40] sm:$0xff]
      %v386 = vld [vmem:[%s376 + $0x48] sm:$0xff]
      %v387 = vld [vmem:[%s376 + $0x50] sm:$0xff]
      %v388 = vld [vmem:[%s376 + $0x58] sm:$0xff]
      %v389 = vld [vmem:[%s376 + $0x60] sm:$0xff]
      %v390 = vld [vmem:[%s376 + $0x68] sm:$0xff]
      %v391 = vld [vmem:[%s376 + $0x70] sm:$0xff]
      %v392 = vld [vmem:[%s376 + $0x78] sm:$0xff]
      %393 = vmatpush.msra.mxu0 %v392
      %394 = vmatpush.msra.mxu0 %v391
      %395 = vmatpush.msra.mxu0 %v390
      %396 = vmatpush.msra.mxu0 %v389
      %397 = vmatpush.msra.mxu0 %v388
      %398 = vmatpush.msra.mxu0 %v387
      %399 = vmatpush.msra.mxu0 %v386
      %400 = vmatpush.msra.mxu0 %v385
      %401 = vmatpush.msra.mxu0 %v384
      %402 = vmatpush.msra.mxu0 %v383
      %403 = vmatpush.msra.mxu0 %v382
      %404 = vmatpush.msra.mxu0 %v381
      %405 = vmatpush.msra.mxu0 %v380
      %406 = vmatpush.msra.mxu0 %v379
      %407 = vmatpush.msra.mxu0 %v378
      %408 = vmatpush.msra.mxu0 %v377
      %409 = vmatmul.f32.gmra.mxu0 %v374
      %v410 = vpop.f32.mrf.mxu0
      %v411 = vadd.f32 0.0, %v410
      %412 = vmatmul.f32.gmra.mxu0 %v375
      %v413 = vpop.f32.mrf.mxu0
      %v414 = vadd.f32 0.0, %v413
      %415 = vdwg.mxu0
      %v416 = vadd.f32 %v369, %v411
      %v417 = vadd.f32 %v372, %v414
      %v418 = vld [vmem:[%s3] sm:$0x1]
      %v420 = vperm.slane %v418, 0
      %v422 = vadd.f32 %v416, %v420
      %v423 = vadd.f32 %v417, %v420
      %v424 = vmax.f32 %v422, 0.0
      %v425 = vmax.f32 %v423, 0.0
      %426 = vst [vmem:[#allocation3] sm:$0x1] 0.0
      %427 = vst [vmem:[#allocation3 + $0x11] sm:$0x1] 0.0
      %428 = vst [vmem:[#allocation3 + $0x1] sm:$0xff] %v424
      %429 = vst [vmem:[#allocation3 + $0x9] sm:$0xff] %v425
      %v430 = vld [vmem:[#allocation3] sm:$0xff]
      %v431 = vld [vmem:[#allocation3 + $0x8] sm:$0xff]
      %v432 = vld [vmem:[%s4] sm:$0xff]
      %v433 = vld [vmem:[%s4 + $0x8] sm:$0xff]
      %v434 = vld [vmem:[%s4 + $0x10] sm:$0xff]
      %v435 = vld [vmem:[%s4 + $0x18] sm:$0xff]
      %v436 = vld [vmem:[%s4 + $0x20] sm:$0xff]
      %v437 = vld [vmem:[%s4 + $0x28] sm:$0xff]
      %v438 = vld [vmem:[%s4 + $0x30] sm:$0xff]
      %v439 = vld [vmem:[%s4 + $0x38] sm:$0xff]
      %v440 = vld [vmem:[%s4 + $0x40] sm:$0xff]
      %v441 = vld [vmem:[%s4 + $0x48] sm:$0xff]
      %v442 = vld [vmem:[%s4 + $0x50] sm:$0xff]
      %v443 = vld [vmem:[%s4 + $0x58] sm:$0xff]
      %v444 = vld [vmem:[%s4 + $0x60] sm:$0xff]
      %v445 = vld [vmem:[%s4 + $0x68] sm:$0xff]
      %v446 = vld [vmem:[%s4 + $0x70] sm:$0xff]
      %v447 = vld [vmem:[%s4 + $0x78] sm:$0xff]
      %v448 = vld [vmem:[#allocation3 + $0x1] sm:$0xff]
      %v449 = vld [vmem:[#allocation3 + $0x9] sm:$0xff]
      %s450 = scalar_lea.vmem %s4, 128
      %v451 = vld [vmem:[%s450] sm:$0xff]
      %v452 = vld [vmem:[%s450 + $0x8] sm:$0xff]
      %v453 = vld [vmem:[%s450 + $0x10] sm:$0xff]
      %v454 = vld [vmem:[%s450 + $0x18] sm:$0xff]
      %v455 = vld [vmem:[%s450 + $0x20] sm:$0xff]
      %v456 = vld [vmem:[%s450 + $0x28] sm:$0xff]
      %v457 = vld [vmem:[%s450 + $0x30] sm:$0xff]
      %v458 = vld [vmem:[%s450 + $0x38] sm:$0xff]
      %v459 = vld [vmem:[%s450 + $0x40] sm:$0xff]
      %v460 = vld [vmem:[%s450 + $0x48] sm:$0xff]
      %v461 = vld [vmem:[%s450 + $0x50] sm:$0xff]
      %v462 = vld [vmem:[%s450 + $0x58] sm:$0xff]
      %v463 = vld [vmem:[%s450 + $0x60] sm:$0xff]
      %v464 = vld [vmem:[%s450 + $0x68] sm:$0xff]
      %v465 = vld [vmem:[%s450 + $0x70] sm:$0xff]
      %v466 = vld [vmem:[%s450 + $0x78] sm:$0xff]
      %467 = vmatpush.msra.mxu0 %v466
      %468 = vmatpush.msra.mxu0 %v465
      %469 = vmatpush.msra.mxu0 %v464
      %470 = vmatpush.msra.mxu0 %v463
      %471 = vmatpush.msra.mxu0 %v462
      %472 = vmatpush.msra.mxu0 %v461
      %473 = vmatpush.msra.mxu0 %v460
      %474 = vmatpush.msra.mxu0 %v459
      %475 = vmatpush.msra.mxu0 %v458
      %476 = vmatpush.msra.mxu0 %v457
      %477 = vmatpush.msra.mxu0 %v456
      %478 = vmatpush.msra.mxu0 %v455
      %479 = vmatpush.msra.mxu0 %v454
      %480 = vmatpush.msra.mxu0 %v453
      %481 = vmatpush.msra.mxu0 %v452
      %482 = vmatpush.msra.mxu0 %v451
      %483 = vmatmul.f32.gmra.mxu0 %v448
      %v484 = vpop.f32.mrf.mxu0
      %v485 = vadd.f32 0.0, %v484
      %486 = vmatmul.f32.gmra.mxu0 %v449
      %v487 = vpop.f32.mrf.mxu0
      %v488 = vadd.f32 0.0, %v487
      %489 = vdwg.mxu0
      %490 = vmatpush.msra.mxu0 %v447
      %491 = vmatpush.msra.mxu0 %v446
      %492 = vmatpush.msra.mxu0 %v445
      %493 = vmatpush.msra.mxu0 %v444
      %494 = vmatpush.msra.mxu0 %v443
      %495 = vmatpush.msra.mxu0 %v442
      %496 = vmatpush.msra.mxu0 %v441
      %497 = vmatpush.msra.mxu0 %v440
      %498 = vmatpush.msra.mxu0 %v439
      %499 = vmatpush.msra.mxu0 %v438
      %500 = vmatpush.msra.mxu0 %v437
      %501 = vmatpush.msra.mxu0 %v436
      %502 = vmatpush.msra.mxu0 %v435
      %503 = vmatpush.msra.mxu0 %v434
      %504 = vmatpush.msra.mxu0 %v433
      %505 = vmatpush.msra.mxu0 %v432
      %506 = vmatmul.f32.gmra.mxu0 %v430
      %v507 = vpop.f32.mrf.mxu0
      %v508 = vadd.f32 %v485, %v507
      %509 = vmatmul.f32.gmra.mxu0 %v431
      %v510 = vpop.f32.mrf.mxu0
      %v511 = vadd.f32 %v488, %v510
      %512 = vdwg.mxu0
      %v513 = vld [vmem:[#allocation3 + $0x2] sm:$0xff]
      %v514 = vld [vmem:[#allocation3 + $0xa] sm:$0xff]
      %s515 = scalar_lea.vmem %s4, 256
      %v516 = vld [vmem:[%s515] sm:$0xff]
      %v517 = vld [vmem:[%s515 + $0x8] sm:$0xff]
      %v518 = vld [vmem:[%s515 + $0x10] sm:$0xff]
      %v519 = vld [vmem:[%s515 + $0x18] sm:$0xff]
      %v520 = vld [vmem:[%s515 + $0x20] sm:$0xff]
      %v521 = vld [vmem:[%s515 + $0x28] sm:$0xff]
      %v522 = vld [vmem:[%s515 + $0x30] sm:$0xff]
      %v523 = vld [vmem:[%s515 + $0x38] sm:$0xff]
      %v524 = vld [vmem:[%s515 + $0x40] sm:$0xff]
      %v525 = vld [vmem:[%s515 + $0x48] sm:$0xff]
      %v526 = vld [vmem:[%s515 + $0x50] sm:$0xff]
      %v527 = vld [vmem:[%s515 + $0x58] sm:$0xff]
      %v528 = vld [vmem:[%s515 + $0x60] sm:$0xff]
      %v529 = vld [vmem:[%s515 + $0x68] sm:$0xff]
      %v530 = vld [vmem:[%s515 + $0x70] sm:$0xff]
      %v531 = vld [vmem:[%s515 + $0x78] sm:$0xff]
      %532 = vmatpush.msra.mxu0 %v531
      %533 = vmatpush.msra.mxu0 %v530
      %534 = vmatpush.msra.mxu0 %v529
      %535 = vmatpush.msra.mxu0 %v528
      %536 = vmatpush.msra.mxu0 %v527
      %537 = vmatpush.msra.mxu0 %v526
      %538 = vmatpush.msra.mxu0 %v525
      %539 = vmatpush.msra.mxu0 %v524
      %540 = vmatpush.msra.mxu0 %v523
      %541 = vmatpush.msra.mxu0 %v522
      %542 = vmatpush.msra.mxu0 %v521
      %543 = vmatpush.msra.mxu0 %v520
      %544 = vmatpush.msra.mxu0 %v519
      %545 = vmatpush.msra.mxu0 %v518
      %546 = vmatpush.msra.mxu0 %v517
      %547 = vmatpush.msra.mxu0 %v516
      %548 = vmatmul.f32.gmra.mxu0 %v513
      %v549 = vpop.f32.mrf.mxu0
      %v550 = vadd.f32 0.0, %v549
      %551 = vmatmul.f32.gmra.mxu0 %v514
      %v552 = vpop.f32.mrf.mxu0
      %v553 = vadd.f32 0.0, %v552
      %554 = vdwg.mxu0
      %v555 = vadd.f32 %v508, %v550
      %v556 = vadd.f32 %v511, %v553
      %v557 = vld [vmem:[%s5] sm:$0x1]
      %v559 = vperm.slane %v557, 0
      %v561 = vadd.f32 %v555, %v559
      %v562 = vadd.f32 %v556, %v559
      %v563 = vmax.f32 %v561, 0.0
      %v564 = vmax.f32 %v562, 0.0
      %565 = vst [vmem:[%s271] sm:$0xff] %v563
      %566 = vst [vmem:[%s271 + $0x8] sm:$0xff] %v564
      %p567 = scmp.lt.s32.totalorder %s17, 1
      %s568 = scalar_select %p567, %s17, 1
      %s569 = smul.addr %s568, 2
      %s570 = smul.addr %s569, 8
      %s571 = scalar_lea.vmem %s6, %s570
      // Predicated region
      $region45: #{up_forward.1} parent=43 // pred_check
        %p572 = pneg %p171
      $region46: #{up_forward.1} parent=43 // pred_check_branch
        %574 = sbr.rel (%p572) target = $region48
      $region47: #{up_forward.1} parent=43 // pred_region
        _
      $region48: #{up_forward.1} parent=43 // pred_fallthru
        _
    $region44: #{up_forward.1} parent=5 // pred_fallthru
      _
    %p575 = scmp.le.s32.totalorder 2, %s12
    // Predicated region
    $region49: #{up_forward.1} parent=5 // pred_check
      %p576 = pneg %p575
    $region50: #{up_forward.1} parent=5 // pred_check_branch
      %578 = sbr.rel (%p576) target = $region52
    $region51: #{up_forward.1} parent=5 // pred_region
      %s579 = ssub.s32 %s12, 2
      // Predicated region
      $region53: #{up_forward.1} parent=51 // pred_check
        %p580 = pneg %p177
      $region54: #{up_forward.1} parent=51 // pred_check_branch
        %582 = sbr.rel (%p580) target = $region56
      $region55: #{up_forward.1} parent=51 // pred_region
        %p583 = scmp.lt.s32.totalorder %s18, 1
        %s584 = scalar_select %p583, %s18, 1
        %s585 = smul.addr %s584, 2
        %s586 = smul.addr %s585, 8
        %s587 = scalar_lea.vmem %s6, %s586
      $region56: #{up_forward.1} parent=51 // pred_fallthru
        _
    $region52: #{up_forward.1} parent=5 // pred_fallthru
      _
  $region6: #{up_forward.1} parent=0 // loop_footer
    %s16 = sadd.s32 1, %s12
  $region7: #{up_forward.1} parent=0 // loop_footer_branch
    %11 = sbr.rel target = $region3
  $region8: #{up_forward.1} parent=0 // loop_exit
    _

</llo_original>
